<compile_context>
chip_gen: v5e
topology: v5e:2x2
jax: 0.10.0
libtpu: 0.0.40
codegen_flags: <defaults>
</compile_context>

<pallas_src>
import functools

import jax
import jax.numpy as jnp
from jax.experimental import pallas as pl
from jax.experimental.pallas import tpu as pltpu


def _round_up(x, m):
    return ((x + m - 1) // m) * m


def _reg_loss_kernel(out_ref, ind_ref, mask_ref, tgt_ref, loss_ref, *, hw):
    """Grid = (B, HW_chunks); every step is independent ("parallel", "parallel").

    Each step gathers the predictions whose index falls inside this HW chunk via a
    one-hot MXU contraction and emits the masked-L1 per-dim partial sum (D, 1)."""
    c = pl.program_id(1)

    feat = out_ref[...]                       # (D, CHUNK)  f32 or bf16
    ind = ind_ref[...]                        # (1, M_pad)  i32  (padded lanes = -1)
    tgt = tgt_ref[...]                        # (D, M_pad)  f32
    msk = mask_ref[...]                       # (1, M_pad)  f32

    chunk = feat.shape[1]
    m_pad = ind.shape[1]
    base = c * chunk

    # Zero the (unspecified) OOB tail of the last block.  Only emitted when HW is not a
    # multiple of the chunk size; keeps NaN/Inf garbage out of the MXU accumulation.
    if hw % chunk != 0:
        col = base + jax.lax.broadcasted_iota(jnp.int32, (1, chunk), 1)   # (1, CHUNK)
        feat = jnp.where(col < hw, feat, jnp.zeros_like(feat))

    # Grid-invariant iota; shift the (tiny) index vector instead of the big iota.
    pos = jax.lax.broadcasted_iota(jnp.int32, (chunk, m_pad), 0)          # (CHUNK, M_pad)
    local = ind - base                                                    # (1, M_pad)
    onehot = (pos == local).astype(jnp.bfloat16)                          # (CHUNK, M_pad)

    dims = (((1,), (0,)), ((), ()))
    if feat.dtype == jnp.bfloat16:
        # bf16 x {0,1} with f32 accumulation reproduces the gather exactly: 1 MXU pass.
        pred = jax.lax.dot_general(feat, onehot, dims,
                                   preferred_element_type=jnp.float32)    # (D, M_pad)
    else:
        # Exact f32 gather via 3-term bf16 split (equivalent to HIGHEST for a one-hot RHS).
        f32 = feat.astype(jnp.float32)
        s1 = f32.astype(jnp.bfloat16)
        r1 = f32 - s1.astype(jnp.float32)
        s2 = r1.astype(jnp.bfloat16)
        s3 = (r1 - s2.astype(jnp.float32)).astype(jnp.bfloat16)
        pred = (jax.lax.dot_general(s1, onehot, dims, preferred_element_type=jnp.float32)
                + jax.lax.dot_general(s2, onehot, dims, preferred_element_type=jnp.float32)
                + jax.lax.dot_general(s3, onehot, dims, preferred_element_type=jnp.float32))

    # mask = mask.expand_as(gt) * (~isnan(gt))
    mm = msk * jnp.logical_not(jnp.isnan(tgt)).astype(jnp.float32)        # (D, M_pad)
    # Each valid index lands in exactly one chunk -> partial sums add up to the full loss.
    hit = jnp.logical_and(ind >= base, ind < base + chunk)                # (1, M_pad)
    diff = jnp.where(hit, jnp.abs(pred - tgt) * mm, 0.0)                  # (D, M_pad)
    loss_ref[...] = jnp.sum(diff, axis=1, keepdims=True)                  # (D, 1)


def reg_loss(output, mask, ind, target, *, chunk=2048):
    """output: (B, D, H, W); mask: (B, M); ind: (B, M); target: (B, M, D)
    returns: (D,) float32 — matches PyTorch RegLoss.forward output.

    Keep `output` in bf16 if the head emits bf16 (single-pass exact MXU gather);
    f32 inputs use an exact 3-pass bf16-split gather."""
    B, D, H, W = output.shape
    M = ind.shape[1]
    HW = H * W

    # Lane-friendly padding of the object axis; padded ind lanes = -1 (never match).
    m_pad = _round_up(max(M, 1), 128)

    # HW tile: multiple of 128, never larger than the plane (so blocks never exceed the
    # array); the ragged tail is zeroed in-kernel instead of a full-tensor pad copy.
    chunk = _round_up(max(chunk, 128), 128)
    max_chunk = max(128, (HW // 128) * 128)
    chunk = min(chunk, max_chunk)

    out_flat = output.reshape(B, D, HW)          # keep input dtype (f32 or bf16)
    if HW < chunk:                               # only when HW < 128: one tiny pad
        out_flat = jnp.pad(out_flat, ((0, 0), (0, 0), (0, chunk - HW)))
    hw_len = out_flat.shape[2]
    n_chunks = pl.cdiv(hw_len, chunk)

    ind_p = jnp.pad(ind.astype(jnp.int32), ((0, 0), (0, m_pad - M)),
                    constant_values=-1).reshape(B, 1, m_pad)
    mask_f = mask.astype(jnp.float32)
    mask_p = jnp.pad(mask_f, ((0, 0), (0, m_pad - M))).reshape(B, 1, m_pad)
    tgt_t = jnp.transpose(target.astype(jnp.float32), (0, 2, 1))          # (B, D, M)
    tgt_p = jnp.pad(tgt_t, ((0, 0), (0, 0), (0, m_pad - M)))              # (B, D, M_pad)

    kernel = functools.partial(_reg_loss_kernel, hw=HW)

    partial = pl.pallas_call(
        kernel,
        out_shape=jax.ShapeDtypeStruct((B, n_chunks, D, 1), jnp.float32),
        grid_spec=pltpu.PrefetchScalarGridSpec(
            num_scalar_prefetch=0,
            grid=(B, n_chunks),
            in_specs=[
                pl.BlockSpec((None, D, chunk), lambda b, c: (b, 0, c)),
                pl.BlockSpec((None, 1, m_pad), lambda b, c: (b, 0, 0)),
                pl.BlockSpec((None, 1, m_pad), lambda b, c: (b, 0, 0)),
                pl.BlockSpec((None, D, m_pad), lambda b, c: (b, 0, 0)),
            ],
            out_specs=pl.BlockSpec((None, None, D, 1), lambda b, c: (b, c, 0, 0)),
        ),
        compiler_params=pltpu.CompilerParams(
            dimension_semantics=("parallel", "parallel"),
            vmem_limit_bytes=48 * 1024 * 1024),
    )(out_flat, ind_p, mask_p, tgt_p)

    # num = mask.float().sum() (original, unpadded mask) and the tiny final reduce/divide.
    num = jnp.sum(mask_f)
    loss = jnp.sum(partial.reshape(B * n_chunks, D), axis=0) / (num + 0.0001)
    return loss


def reg_loss_ref(output, mask, ind, target):
    """Pure-JAX reference mirroring the PyTorch ops."""
    B, D, H, W = output.shape
    out_flat = output.reshape(B, D, H * W).astype(jnp.float32)
    # pred[b, m, d] = out_flat[b, d, ind[b, m]]
    pred = jax.vmap(lambda f, i: f[:, i].T)(out_flat, ind.astype(jnp.int32))
    num = jnp.sum(mask.astype(jnp.float32))
    m = mask.astype(jnp.float32)[:, :, None] * jnp.ones_like(target)
    isnotnan = jnp.logical_not(jnp.isnan(target)).astype(jnp.float32)
    m = m * isnotnan
    regr = pred * m
    gt = target * m
    loss = jnp.abs(regr - gt)                 # (B, M, D)
    loss = jnp.transpose(loss, (2, 1, 0))     # (D, M, B)
    loss = jnp.sum(loss, axis=2)
    loss = jnp.sum(loss, axis=1)
    return loss / (num + 0.0001)


if __name__ == "__main__":
    key = jax.random.PRNGKey(0)

    # --- Case 1: canonical small shapes --------------------------------------------
    B, D, H, W, M = 2, 4, 16, 16, 8
    k1, k2, k3, k4 = jax.random.split(key, 4)
    output = jax.random.normal(k1, (B, D, H, W), dtype=jnp.float32)
    target = jax.random.normal(k2, (B, M, D), dtype=jnp.float32)
    ind = jax.random.randint(k3, (B, M), 0, H * W, dtype=jnp.int32)
    mask = (jax.random.uniform(k4, (B, M)) > 0.3).astype(jnp.float32)

    ref = reg_loss_ref(output, mask, ind, target)

    loss = reg_loss(output, mask, ind, target)             # single-chunk path
    jax.block_until_ready(loss)
    assert loss.shape == (D,)
    assert jnp.allclose(loss, ref, rtol=1e-5, atol=1e-5), (loss, ref)

    loss_multi = reg_loss(output, mask, ind, target, chunk=128)   # multi-chunk path
    jax.block_until_ready(loss_multi)
    assert jnp.allclose(loss_multi, ref, rtol=1e-5, atol=1e-5), (loss_multi, ref)

    # bf16 feature path: single-pass exact MXU gather.
    out_bf = output.astype(jnp.bfloat16)
    ref_bf = reg_loss_ref(out_bf.astype(jnp.float32), mask, ind, target)
    loss_bf = reg_loss(out_bf, mask, ind, target)
    jax.block_until_ready(loss_bf)
    assert jnp.allclose(loss_bf, ref_bf, rtol=1e-4, atol=1e-4), (loss_bf, ref_bf)

    # --- Case 2: ragged HW (exercises the in-kernel tail masking, no wrapper pad) ---
    B2, D2, H2, W2, M2 = 2, 6, 13, 11, 5
    j1, j2, j3, j4 = jax.random.split(jax.random.PRNGKey(1), 4)
    output2 = jax.random.normal(j1, (B2, D2, H2, W2), dtype=jnp.float32)
    target2 = jax.random.normal(j2, (B2, M2, D2), dtype=jnp.float32)
    ind2 = jax.random.randint(j3, (B2, M2), 0, H2 * W2, dtype=jnp.int32)
    mask2 = (jax.random.uniform(j4, (B2, M2)) > 0.3).astype(jnp.float32)

    ref2 = reg_loss_ref(output2, mask2, ind2, target2)
    loss2 = reg_loss(output2, mask2, ind2, target2, chunk=128)
    jax.block_until_ready(loss2)
    assert jnp.allclose(loss2, ref2, rtol=1e-5, atol=1e-5), (loss2, ref2)

    print("KERNEL_OK")
</pallas_src>

<mosaic_0001>
module attributes {stable_mosaic.version = 11 : i64} {
  func.func @_reg_loss_kernel(%arg0: i32, %arg1: i32, %arg2: memref<1x4x256xf32, #tpu.memory_space<vmem>>, %arg3: memref<1x1x128xi32, #tpu.memory_space<vmem>>, %arg4: memref<1x1x128xf32, #tpu.memory_space<vmem>>, %arg5: memref<1x4x128xf32, #tpu.memory_space<vmem>>, %arg6: memref<1x1x4x1xf32, #tpu.memory_space<vmem>>) attributes {dimension_semantics = [#tpu.dimension_semantics<parallel>, #tpu.dimension_semantics<parallel>], iteration_bounds = array<i64: 2, 1>, scalar_prefetch = 0 : i64, scratch_operands = 0 : i64, tpu.core_type = #tpu.core_type<tc>, window_params = [{transform_indices = @transform_0, window_bounds = array<i64: 1, 4, 256>}, {transform_indices = @transform_1, window_bounds = array<i64: 1, 1, 128>}, {transform_indices = @transform_2, window_bounds = array<i64: 1, 1, 128>}, {transform_indices = @transform_3, window_bounds = array<i64: 1, 4, 128>}, {transform_indices = @transform_4, window_bounds = array<i64: 1, 1, 4, 1>}]} {
    %c0 = arith.constant 0 : index
    %c0_0 = arith.constant 0 : index
    %c0_1 = arith.constant 0 : index
    %0 = vector.load %arg2[%c0, %c0_0, %c0_1] : memref<1x4x256xf32, #tpu.memory_space<vmem>>, vector<1x4x256xf32>
    %1 = vector.shape_cast %0 : vector<1x4x256xf32> to vector<4x256xf32>
    %c0_2 = arith.constant 0 : index
    %c0_3 = arith.constant 0 : index
    %c0_4 = arith.constant 0 : index
    %2 = vector.load %arg3[%c0_2, %c0_3, %c0_4] : memref<1x1x128xi32, #tpu.memory_space<vmem>>, vector<1x1x128xi32>
    %3 = vector.shape_cast %2 : vector<1x1x128xi32> to vector<1x128xi32>
    %c0_5 = arith.constant 0 : index
    %c0_6 = arith.constant 0 : index
    %c0_7 = arith.constant 0 : index
    %4 = vector.load %arg5[%c0_5, %c0_6, %c0_7] : memref<1x4x128xf32, #tpu.memory_space<vmem>>, vector<1x4x128xf32>
    %5 = vector.shape_cast %4 : vector<1x4x128xf32> to vector<4x128xf32>
    %c0_8 = arith.constant 0 : index
    %c0_9 = arith.constant 0 : index
    %c0_10 = arith.constant 0 : index
    %6 = vector.load %arg4[%c0_8, %c0_9, %c0_10] : memref<1x1x128xf32, #tpu.memory_space<vmem>>, vector<1x1x128xf32>
    %7 = vector.shape_cast %6 : vector<1x1x128xf32> to vector<1x128xf32>
    %c256_i32 = arith.constant 256 : i32
    %8 = arith.muli %arg1, %c256_i32 : i32
    %9 = tpu.iota {dimensions = array<i32: 0>} : vector<256x128xi32>
    %10 = vector.broadcast %8 : i32 to vector<1x128xi32>
    %11 = arith.subi %3, %10 : vector<1x128xi32>
    %12 = vector.broadcast %11 : vector<1x128xi32> to vector<256x128xi32>
    %13 = arith.cmpi eq, %9, %12 : vector<256x128xi32>
    %14 = arith.extui %13 : vector<256x128xi1> to vector<256x128xi32>
    %15 = arith.sitofp %14 : vector<256x128xi32> to vector<256x128xf32>
    %16 = arith.truncf %15 : vector<256x128xf32> to vector<256x128xbf16>
    %17 = arith.truncf %1 : vector<4x256xf32> to vector<4x256xbf16>
    %18 = arith.extf %17 : vector<4x256xbf16> to vector<4x256xf32>
    %19 = arith.subf %1, %18 : vector<4x256xf32>
    %20 = arith.truncf %19 : vector<4x256xf32> to vector<4x256xbf16>
    %21 = arith.extf %20 : vector<4x256xbf16> to vector<4x256xf32>
    %22 = arith.subf %19, %21 : vector<4x256xf32>
    %23 = arith.truncf %22 : vector<4x256xf32> to vector<4x256xbf16>
    %cst = arith.constant dense<0.000000e+00> : vector<4x128xf32>
    %24 = tpu.matmul %17, %16, %cst {dimension_numbers = #tpu.dot_dimension_numbers<[1], [0], [0], [1], [0, 0, 1, 1], [], []>} : vector<4x256xbf16>, vector<256x128xbf16>, vector<4x128xf32> -> vector<4x128xf32>
    %cst_11 = arith.constant dense<0.000000e+00> : vector<4x128xf32>
    %25 = tpu.matmul %20, %16, %cst_11 {dimension_numbers = #tpu.dot_dimension_numbers<[1], [0], [0], [1], [0, 0, 1, 1], [], []>} : vector<4x256xbf16>, vector<256x128xbf16>, vector<4x128xf32> -> vector<4x128xf32>
    %26 = arith.addf %24, %25 : vector<4x128xf32>
    %cst_12 = arith.constant dense<0.000000e+00> : vector<4x128xf32>
    %27 = tpu.matmul %23, %16, %cst_12 {dimension_numbers = #tpu.dot_dimension_numbers<[1], [0], [0], [1], [0, 0, 1, 1], [], []>} : vector<4x256xbf16>, vector<256x128xbf16>, vector<4x128xf32> -> vector<4x128xf32>
    %28 = arith.addf %26, %27 : vector<4x128xf32>
    %29 = arith.cmpf one, %5, %5 : vector<4x128xf32>
    %cst_13 = arith.constant dense<true> : vector<4x128xi1>
    %30 = arith.xori %29, %cst_13 : vector<4x128xi1>
    %31 = arith.extui %30 : vector<4x128xi1> to vector<4x128xi32>
    %32 = arith.sitofp %31 : vector<4x128xi32> to vector<4x128xf32>
    %33 = vector.broadcast %7 : vector<1x128xf32> to vector<4x128xf32>
    %34 = arith.mulf %33, %32 : vector<4x128xf32>
    %35 = vector.broadcast %8 : i32 to vector<1x128xi32>
    %36 = arith.cmpi sge, %3, %35 : vector<1x128xi32>
    %c256_i32_14 = arith.constant 256 : i32
    %37 = arith.addi %8, %c256_i32_14 : i32
    %38 = vector.broadcast %37 : i32 to vector<1x128xi32>
    %39 = arith.cmpi slt, %3, %38 : vector<1x128xi32>
    %40 = arith.andi %36, %39 : vector<1x128xi1>
    %41 = arith.subf %28, %5 : vector<4x128xf32>
    %42 = math.absf %41 : vector<4x128xf32>
    %43 = arith.mulf %42, %34 : vector<4x128xf32>
    %cst_15 = arith.constant 0.000000e+00 : f32
    %44 = vector.shape_cast %40 : vector<1x128xi1> to vector<1x128xi1>
    %45 = vector.broadcast %44 : vector<1x128xi1> to vector<4x128xi1>
    %46 = vector.broadcast %cst_15 : f32 to vector<4x128xf32>
    %47 = arith.select %45, %43, %46 : vector<4x128xi1>, vector<4x128xf32>
    %cst_16 = arith.constant dense<0.000000e+00> : vector<4xf32>
    %48 = vector.multi_reduction <add>, %47, %cst_16 [1] : vector<4x128xf32> to vector<4xf32>
    %49 = vector.shape_cast %48 : vector<4xf32> to vector<4x1xf32>
    %c0_17 = arith.constant 0 : index
    %c0_18 = arith.constant 0 : index
    %c0_19 = arith.constant 0 : index
    %c0_20 = arith.constant 0 : index
    %50 = vector.load %arg6[%c0_17, %c0_18, %c0_19, %c0_20] : memref<1x1x4x1xf32, #tpu.memory_space<vmem>>, vector<1x1x4x1xf32>
    %51 = vector.shape_cast %50 : vector<1x1x4x1xf32> to vector<4x1xf32>
    %52 = vector.shape_cast %49 : vector<4x1xf32> to vector<1x1x4x1xf32>
    tpu.vector_store %arg6[%c0_17, %c0_18, %c0_19, %c0_20], %52 {strides = array<i32>} : memref<1x1x4x1xf32, #tpu.memory_space<vmem>>, vector<1x1x4x1xf32>,
    return
  }
  func.func @transform_0(%arg0: i32, %arg1: i32) -> (i32, i32, i32) {
    %c0_i32 = arith.constant 0 : i32
    %c0_i32_0 = arith.constant 0 : i32
    return %arg0, %c0_i32, %arg1 : i32, i32, i32
  }
  func.func @transform_1(%arg0: i32, %arg1: i32) -> (i32, i32, i32) {
    %c0_i32 = arith.constant 0 : i32
    %c0_i32_0 = arith.constant 0 : i32
    %c0_i32_1 = arith.constant 0 : i32
    return %arg0, %c0_i32, %c0_i32_0 : i32, i32, i32
  }
  func.func @transform_2(%arg0: i32, %arg1: i32) -> (i32, i32, i32) {
    %c0_i32 = arith.constant 0 : i32
    %c0_i32_0 = arith.constant 0 : i32
    %c0_i32_1 = arith.constant 0 : i32
    return %arg0, %c0_i32, %c0_i32_0 : i32, i32, i32
  }
  func.func @transform_3(%arg0: i32, %arg1: i32) -> (i32, i32, i32) {
    %c0_i32 = arith.constant 0 : i32
    %c0_i32_0 = arith.constant 0 : i32
    %c0_i32_1 = arith.constant 0 : i32
    return %arg0, %c0_i32, %c0_i32_0 : i32, i32, i32
  }
  func.func @transform_4(%arg0: i32, %arg1: i32) -> (i32, i32, i32, i32) {
    %c0_i32 = arith.constant 0 : i32
    %c0_i32_0 = arith.constant 0 : i32
    %c0_i32_1 = arith.constant 0 : i32
    return %arg0, %arg1, %c0_i32, %c0_i32_0 : i32, i32, i32, i32
  }
}

</mosaic_0001>

<llo_original>
// kernel: tpu_custom_call.1
$region0: #{tpu_custom_call.1}
  #allocation0 [shape = 'u32[]', space=smem, size = 0x4, offset = 0x4, fixed_abs, tag = 'smem constant byte address 0x4 - core index']
  #allocation1 [shape = 'u32[72,128]{1,0:T(1,128)}', space=vmem, size = 0x9000, scoped, tag = 'internal scratch']
  %s0 = inlined_call_operand.hbm [shape: f32[2,4,256], index: 0, kind: input, shape index: {}]
  %s1 = inlined_call_operand.hbm [shape: s32[2,1,128], index: 1, kind: input, shape index: {}]
  %s2 = inlined_call_operand.hbm [shape: f32[2,1,128], index: 2, kind: input, shape index: {}]
  %s3 = inlined_call_operand.hbm [shape: f32[2,4,128], index: 3, kind: input, shape index: {}]
  %s4 = inlined_call_operand.vmem [shape: f32[2,1,4,1], index: 4, kind: output, shape index: {}]
  %s5 = sld [smem:[#allocation0]]
  $region65: #{tpu_custom_call.1} parent=0
    _
  %s7 = ssub.s32 1, %s5
  %s8 = scalar_select 0, %s7, %s5
  $region1: #{tpu_custom_call.1} parent=0
    #allocation2 [shape = 'u8[8192]{0}', space=vmem, size = 0x2000, scoped, tag = 'input window, operand 0']
    #allocation3 [shape = 's32[2]{0}', space=sflag, size = 0x8, scoped, tag = 'scoped memory for tpu_custom_call.1']
    #allocation4 [shape = 'u8[1024]{0}', space=vmem, size = 0x400, scoped, tag = 'input window, operand 1']
    #allocation5 [shape = 's32[2]{0}', space=sflag, size = 0x8, scoped, tag = 'scoped memory for tpu_custom_call.1']
    #allocation6 [shape = 'u8[1024]{0}', space=vmem, size = 0x400, scoped, tag = 'input window, operand 2']
    #allocation7 [shape = 'u8[4096]{0}', space=vmem, size = 0x1000, scoped, tag = 'input window, operand 3']
    #allocation8 [shape = 's32[2]{0}', space=sflag, size = 0x8, scoped, tag = 'scoped memory for tpu_custom_call.1']
    %9 = vsyncpa [#allocation3], 0
    %s10 = scalar_lea.sflag [#allocation3], 1
    %11 = vsyncpa %s10, 0
    %12 = vsyncpa [#allocation5], 0
    %s13 = scalar_lea.sflag [#allocation5], 1
    %14 = vsyncpa %s13, 0
    %15 = vsyncpa [#allocation8], 0
    %s16 = scalar_lea.sflag [#allocation8], 1
    %17 = vsyncpa %s16, 0
    loop: start=0, step=1, limit=4
    $region2: #{tpu_custom_call.1} parent=1 // loop_pre_header
      _
    $region3: #{tpu_custom_call.1} parent=1 // loop_header
      %s19 = sphi 0, %s23
      %p20 = scmp.ge.s32.totalorder %s19, 4
      %s26 = sphi 0, %s38
      %s27 = sphi 0, %s34
      %s28 = sphi 0, %s26
      %s29 = sphi 0, %s27
      %s30 = sphi 0, %s28
      %s31 = sphi 0, %s29
      %s43 = sphi 0, %s45
      %s46 = sphi 0, %s43
      %s47 = sphi 0, %s46
      %s63 = sphi 0, %s47
      %s69 = sphi 0, %s71
      %s72 = sphi 0, %s69
      %s73 = sphi 0, %s72
      %s89 = sphi 0, %s73
      %s95 = sphi 0, %s97
      %s98 = sphi 0, %s95
      %s99 = sphi 0, %s98
      %s115 = sphi 0, %s99
      %s121 = sphi 0, %s123
      %s124 = sphi 0, %s121
      %s125 = sphi 0, %s124
      %s141 = sphi 0, %s125
      %s149 = sphi 0, %s151
      %s152 = sphi 0, %s149
      %s153 = sphi 0, %s152
      %s169 = sphi 0, %s153
    $region4: #{tpu_custom_call.1} parent=1 // loop_header_branch
      %22 = sbr.rel (%p20) target = $region8
    $region5: #{tpu_custom_call.1} parent=1 // loop_body
      %s24 = ssub.s32 %s19, 1
      %s25 = ssub.s32 %s19, 2
      %s32 = sadd.s32 1, %s27
      %p33 = scmp.ge.s32.totalorder %s32, 1
      %s34 = scalar_select %p33, 0, %s32
      %s35 = sadd.s32 1, %s26
      %s36 = scalar_select %p33, %s35, %s26
      %p37 = scmp.ge.s32.totalorder %s36, 2
      %s38 = scalar_select %p37, 0, %s36
      %s39 = ssub.s32 %s26, %s38
      %s40 = ssub.s32 %s27, %s34
      %s41 = sor.u32 %s39, %s40
      %p42 = scmp.eq.s32.totalorder %s41, 0
      %s44 = sadd.s32 %s43, 1
      %s45 = scalar_select %p42, %s43, %s44
      %p48 = pneg %p42
      %p49 = scmp.eq.s32.totalorder %s19, 1
      %p50 = por %p48, %p49
      %p51 = scmp.ne.s32.totalorder %s43, %s46
      %p52 = scmp.eq.s32.totalorder %s19, 0
      %p53 = por %p51, %p52
      %p54 = scmp.ne.s32.totalorder %s43, %s46
      %p55 = scmp.eq.s32.totalorder %s24, 1
      %p56 = por %p54, %p55
      %p57 = scmp.ne.s32.totalorder %s46, %s47
      %p58 = scmp.eq.s32.totalorder %s24, 0
      %p59 = por %p57, %p58
      %p60 = scmp.ne.s32.totalorder %s46, %s47
      %p61 = scmp.eq.s32.totalorder %s25, 1
      %p62 = por %p60, %p61
      %p64 = scmp.ne.s32.totalorder %s47, %s63
      %p65 = scmp.eq.s32.totalorder %s25, 0
      %p66 = por %p64, %p65
      %s67 = ssub.s32 %s26, %s38
      %p68 = scmp.eq.s32.totalorder %s67, 0
      %s70 = sadd.s32 %s69, 1
      %s71 = scalar_select %p68, %s69, %s70
      %p74 = pneg %p68
      %p75 = scmp.eq.s32.totalorder %s19, 1
      %p76 = por %p74, %p75
      %p77 = scmp.ne.s32.totalorder %s69, %s72
      %p78 = scmp.eq.s32.totalorder %s19, 0
      %p79 = por %p77, %p78
      %p80 = scmp.ne.s32.totalorder %s69, %s72
      %p81 = scmp.eq.s32.totalorder %s24, 1
      %p82 = por %p80, %p81
      %p83 = scmp.ne.s32.totalorder %s72, %s73
      %p84 = scmp.eq.s32.totalorder %s24, 0
      %p85 = por %p83, %p84
      %p86 = scmp.ne.s32.totalorder %s72, %s73
      %p87 = scmp.eq.s32.totalorder %s25, 1
      %p88 = por %p86, %p87
      %p90 = scmp.ne.s32.totalorder %s73, %s89
      %p91 = scmp.eq.s32.totalorder %s25, 0
      %p92 = por %p90, %p91
      %s93 = ssub.s32 %s26, %s38
      %p94 = scmp.eq.s32.totalorder %s93, 0
      %s96 = sadd.s32 %s95, 1
      %s97 = scalar_select %p94, %s95, %s96
      %p100 = pneg %p94
      %p101 = scmp.eq.s32.totalorder %s19, 1
      %p102 = por %p100, %p101
      %p103 = scmp.ne.s32.totalorder %s95, %s98
      %p104 = scmp.eq.s32.totalorder %s19, 0
      %p105 = por %p103, %p104
      %p106 = scmp.ne.s32.totalorder %s95, %s98
      %p107 = scmp.eq.s32.totalorder %s24, 1
      %p108 = por %p106, %p107
      %p109 = scmp.ne.s32.totalorder %s98, %s99
      %p110 = scmp.eq.s32.totalorder %s24, 0
      %p111 = por %p109, %p110
      %p112 = scmp.ne.s32.totalorder %s98, %s99
      %p113 = scmp.eq.s32.totalorder %s25, 1
      %p114 = por %p112, %p113
      %p116 = scmp.ne.s32.totalorder %s99, %s115
      %p117 = scmp.eq.s32.totalorder %s25, 0
      %p118 = por %p116, %p117
      %s119 = ssub.s32 %s26, %s38
      %p120 = scmp.eq.s32.totalorder %s119, 0
      %s122 = sadd.s32 %s121, 1
      %s123 = scalar_select %p120, %s121, %s122
      %p126 = pneg %p120
      %p127 = scmp.eq.s32.totalorder %s19, 1
      %p128 = por %p126, %p127
      %p129 = scmp.ne.s32.totalorder %s121, %s124
      %p130 = scmp.eq.s32.totalorder %s19, 0
      %p131 = por %p129, %p130
      %p132 = scmp.ne.s32.totalorder %s121, %s124
      %p133 = scmp.eq.s32.totalorder %s24, 1
      %p134 = por %p132, %p133
      %p135 = scmp.ne.s32.totalorder %s124, %s125
      %p136 = scmp.eq.s32.totalorder %s24, 0
      %p137 = por %p135, %p136
      %p138 = scmp.ne.s32.totalorder %s124, %s125
      %p139 = scmp.eq.s32.totalorder %s25, 1
      %p140 = por %p138, %p139
      %p142 = scmp.ne.s32.totalorder %s125, %s141
      %p143 = scmp.eq.s32.totalorder %s25, 0
      %p144 = por %p142, %p143
      %s145 = ssub.s32 %s26, %s38
      %s146 = ssub.s32 %s27, %s34
      %s147 = sor.u32 %s145, %s146
      %p148 = scmp.eq.s32.totalorder %s147, 0
      %s150 = sadd.s32 %s149, 1
      %s151 = scalar_select %p148, %s149, %s150
      %p154 = pneg %p148
      %p155 = scmp.eq.s32.totalorder %s19, 1
      %p156 = por %p154, %p155
      %p157 = scmp.ne.s32.totalorder %s149, %s152
      %p158 = scmp.eq.s32.totalorder %s19, 0
      %p159 = por %p157, %p158
      %p160 = scmp.ne.s32.totalorder %s149, %s152
      %p161 = scmp.eq.s32.totalorder %s24, 1
      %p162 = por %p160, %p161
      %p163 = scmp.ne.s32.totalorder %s152, %s153
      %p164 = scmp.eq.s32.totalorder %s24, 0
      %p165 = por %p163, %p164
      %p166 = scmp.ne.s32.totalorder %s152, %s153
      %p167 = scmp.eq.s32.totalorder %s25, 1
      %p168 = por %p166, %p167
      %p170 = scmp.ne.s32.totalorder %s153, %s169
      %p171 = scmp.eq.s32.totalorder %s25, 0
      %p172 = por %p170, %p171
      %p173 = scmp.le.s32.totalorder 1, %s19
      %p174 = scmp.lt.s32.totalorder %s19, 3
      %p175 = pnand %p173, %p174
      %p176 = pneg %p175
      // Predicated region
      $region9: #{tpu_custom_call.1} parent=5 // pred_check
        _
      $region10: #{tpu_custom_call.1} parent=5 // pred_check_branch
        %178 = sbr.rel (%p175) target = $region12
      $region11: #{tpu_custom_call.1} parent=5 // pred_region
        %s179 = ssub.s32 %s19, 1
      $region12: #{tpu_custom_call.1} parent=5 // pred_fallthru
        _
      %p180 = scmp.lt.s32.totalorder %s19, 2
      // Predicated region
      $region13: #{tpu_custom_call.1} parent=5 // pred_check
        %p181 = pneg %p180
      $region14: #{tpu_custom_call.1} parent=5 // pred_check_branch
        %183 = sbr.rel (%p181) target = $region16
      $region15: #{tpu_custom_call.1} parent=5 // pred_region
        // Predicated region
        $region17: #{tpu_custom_call.1} parent=15 // pred_check
          %p184 = pneg %p53
        $region18: #{tpu_custom_call.1} parent=15 // pred_check_branch
          %186 = sbr.rel (%p184) target = $region20
        $region19: #{tpu_custom_call.1} parent=15 // pred_region
          %s187 = sand.u32 %s43, 1
          %s188 = scalar_lea.sflag [#allocation3], %s187
          %s189 = sand.u32 %s43, 1
          %s190 = smul.addr %s189, 8
          %s191 = scalar_lea.vmem [#allocation2], %s190
          %s192 = smul.u32 2, %s27
          %194 = vsyncadd %s188, 0
          %s195 = smul.addr %s26, 2
          %s196 = sadd.s32 %s192, %s195
          %s197 = smul.addr %s196, 4
          %s198 = scalar_lea.hbm %s0, %s197
          %s200 = sshll.u32 %s198, 4
          %s201 = int_to_ptr.hbm [resolvable:$true] %s200
          %s202 = sshll.u32 %s191, 4
          %s203 = int_to_ptr.vmem [resolvable:$true] %s202
          %205 = dma.hbm_to_vmem [thread:$0]  %s201, 128, %s203, %s188
        $region20: #{tpu_custom_call.1} parent=15 // pred_fallthru
          _
        // Predicated region
        $region21: #{tpu_custom_call.1} parent=15 // pred_check
          %p206 = pneg %p79
        $region22: #{tpu_custom_call.1} parent=15 // pred_check_branch
          %208 = sbr.rel (%p206) target = $region24
        $region23: #{tpu_custom_call.1} parent=15 // pred_region
          %s209 = sand.u32 %s19, 1
          %s210 = scalar_lea.sflag [#allocation5], %s209
          %s211 = sand.u32 %s69, 1
          %s212 = scalar_lea.vmem [#allocation4], %s211
          %214 = vsyncadd %s210, 0
          %s215 = scalar_lea.hbm %s1, %s26
          %s217 = sshll.u32 %s215, 4
          %s218 = int_to_ptr.hbm [resolvable:$true] %s217
          %s219 = sshll.u32 %s212, 4
          %s220 = int_to_ptr.vmem [resolvable:$true] %s219
          %222 = dma.hbm_to_vmem [thread:$0]  %s218, 16, %s220, %s210
        $region24: #{tpu_custom_call.1} parent=15 // pred_fallthru
          _
        // Predicated region
        $region25: #{tpu_custom_call.1} parent=15 // pred_check
          %p223 = pneg %p105
        $region26: #{tpu_custom_call.1} parent=15 // pred_check_branch
          %225 = sbr.rel (%p223) target = $region28
        $region27: #{tpu_custom_call.1} parent=15 // pred_region
          %s226 = sand.u32 %s19, 1
          %s227 = scalar_lea.sflag [#allocation5], %s226
          %s228 = sand.u32 %s95, 1
          %s229 = scalar_lea.vmem [#allocation6], %s228
          %231 = vsyncadd %s227, 0
          %s232 = scalar_lea.hbm %s2, %s26
          %s234 = sshll.u32 %s232, 4
          %s235 = int_to_ptr.hbm [resolvable:$true] %s234
          %s236 = sshll.u32 %s229, 4
          %s237 = int_to_ptr.vmem [resolvable:$true] %s236
          %239 = dma.hbm_to_vmem [thread:$0]  %s235, 16, %s237, %s227
        $region28: #{tpu_custom_call.1} parent=15 // pred_fallthru
          _
        // Predicated region
        $region29: #{tpu_custom_call.1} parent=15 // pred_check
          %p240 = pneg %p131
        $region30: #{tpu_custom_call.1} parent=15 // pred_check_branch
          %242 = sbr.rel (%p240) target = $region32
        $region31: #{tpu_custom_call.1} parent=15 // pred_region
          %s243 = sand.u32 %s121, 1
          %s244 = scalar_lea.sflag [#allocation8], %s243
          %s245 = sand.u32 %s121, 1
          %s246 = smul.addr %s245, 4
          %s247 = scalar_lea.vmem [#allocation7], %s246
          %249 = vsyncadd %s244, 0
          %s250 = smul.addr %s26, 4
          %s251 = scalar_lea.hbm %s3, %s250
          %s253 = sshll.u32 %s251, 4
          %s254 = int_to_ptr.hbm [resolvable:$true] %s253
          %s255 = sshll.u32 %s247, 4
          %s256 = int_to_ptr.vmem [resolvable:$true] %s255
          %258 = dma.hbm_to_vmem [thread:$0]  %s254, 64, %s256, %s244
        $region32: #{tpu_custom_call.1} parent=15 // pred_fallthru
          _
      $region16: #{tpu_custom_call.1} parent=5 // pred_fallthru
        _
      %p259 = scmp.le.s32.totalorder 1, %s19
      %p260 = scmp.lt.s32.totalorder %s19, 3
      %p261 = pnand %p259, %p260
      %p262 = pneg %p261
      // Predicated region
      $region33: #{tpu_custom_call.1} parent=5 // pred_check
        _
      $region34: #{tpu_custom_call.1} parent=5 // pred_check_branch
        %264 = sbr.rel (%p261) target = $region36
      $region35: #{tpu_custom_call.1} parent=5 // pred_region
        %s265 = ssub.s32 %s19, 1
        %s266 = sand.u32 %s46, 1
        %s267 = scalar_lea.sflag [#allocation3], %s266
        %s268 = sand.u32 %s46, 1
        %s269 = smul.addr %s268, 8
        %s270 = scalar_lea.vmem [#allocation2], %s269
        // Predicated region
        $region37: #{tpu_custom_call.1} parent=35 // pred_check
          %p271 = pneg %p59
        $region38: #{tpu_custom_call.1} parent=35 // pred_check_branch
          %273 = sbr.rel (%p271) target = $region40
        $region39: #{tpu_custom_call.1} parent=35 // pred_region
          %275 = dma.done %s267, 128
        $region40: #{tpu_custom_call.1} parent=35 // pred_fallthru
          _
        %s276 = sand.u32 %s24, 1
        %s277 = scalar_lea.sflag [#allocation5], %s276
        %s278 = sand.u32 %s72, 1
        %s279 = scalar_lea.vmem [#allocation4], %s278
        // Predicated region
        $region41: #{tpu_custom_call.1} parent=35 // pred_check
          %p280 = pneg %p85
        $region42: #{tpu_custom_call.1} parent=35 // pred_check_branch
          %282 = sbr.rel (%p280) target = $region44
        $region43: #{tpu_custom_call.1} parent=35 // pred_region
          %284 = dma.done %s277, 16
        $region44: #{tpu_custom_call.1} parent=35 // pred_fallthru
          _
        %s285 = sand.u32 %s24, 1
        %s286 = scalar_lea.sflag [#allocation5], %s285
        %s287 = sand.u32 %s98, 1
        %s288 = scalar_lea.vmem [#allocation6], %s287
        // Predicated region
        $region45: #{tpu_custom_call.1} parent=35 // pred_check
          %p289 = pneg %p111
        $region46: #{tpu_custom_call.1} parent=35 // pred_check_branch
          %291 = sbr.rel (%p289) target = $region48
        $region47: #{tpu_custom_call.1} parent=35 // pred_region
          %293 = dma.done %s286, 16
        $region48: #{tpu_custom_call.1} parent=35 // pred_fallthru
          _
        %s294 = sand.u32 %s124, 1
        %s295 = scalar_lea.sflag [#allocation8], %s294
        %s296 = sand.u32 %s124, 1
        %s297 = smul.addr %s296, 4
        %s298 = scalar_lea.vmem [#allocation7], %s297
        // Predicated region
        $region49: #{tpu_custom_call.1} parent=35 // pred_check
          %p299 = pneg %p137
        $region50: #{tpu_custom_call.1} parent=35 // pred_check_branch
          %301 = sbr.rel (%p299) target = $region52
        $region51: #{tpu_custom_call.1} parent=35 // pred_region
          %303 = dma.done %s295, 64
        $region52: #{tpu_custom_call.1} parent=35 // pred_fallthru
          _
        %s304 = sand.u32 %s46, 1
        %s305 = scalar_lea.sflag [#allocation3], %s304
        %s306 = sand.u32 %s46, 1
        %s307 = smul.addr %s306, 8
        %s308 = scalar_lea.vmem [#allocation2], %s307
        %p309 = pneg %p59
        %p310 = pneg %p56
        %s311 = sand.u32 %s24, 1
        %s312 = scalar_lea.sflag [#allocation5], %s311
        %s313 = sand.u32 %s72, 1
        %s314 = scalar_lea.vmem [#allocation4], %s313
        %p315 = pneg %p85
        %p316 = pneg %p82
        %s317 = sand.u32 %s24, 1
        %s318 = scalar_lea.sflag [#allocation5], %s317
        %s319 = sand.u32 %s98, 1
        %s320 = scalar_lea.vmem [#allocation6], %s319
        %p321 = pneg %p111
        %p322 = pneg %p108
        %s323 = sand.u32 %s124, 1
        %s324 = scalar_lea.sflag [#allocation8], %s323
        %s325 = sand.u32 %s124, 1
        %s326 = smul.addr %s325, 4
        %s327 = scalar_lea.vmem [#allocation7], %s326
        %p328 = pneg %p137
        %p329 = pneg %p134
        %p330 = pneg %p165
        %p331 = pneg %p162
        %p332 = scmp.lt.s32.totalorder %s28, 1
        %s333 = scalar_select %p332, %s28, 1
        %p334 = scmp.lt.s32.totalorder %s29, 0
        %s335 = scalar_select %p334, %s29, 0
        %s336 = sadd.s32 %s335, %s333
        %s337 = smul.addr %s336, 4
        %s338 = scalar_lea.vmem %s4, %s337
        %s339 = smul.u32 2, %s29
        %p340 = scmp.lt.s32.totalorder %s28, 1
        %s341 = scalar_select %p340, %s28, 1
        %p342 = scmp.lt.s32.totalorder %s29, 0
        %s343 = scalar_select %p342, %s29, 0
        %s344 = sadd.s32 %s343, %s341
        %s345 = smul.addr %s344, 4
        %s346 = scalar_lea.vmem %s4, %s345
        %v347 = vld [vmem:[%s270] sm:$0xff]
        %v348 = vld [vmem:[%s279] sm:$0x1]
        %v349 = vld [vmem:[%s298] sm:$0xf]
        %v350 = vld [vmem:[%s288] sm:$0x1]
        %s351 = smul.u32 %s29, 256
        %v352 = vlaneseq
        %v353 = vshrl.u32 %v352, 7
        %v354 = vadd.s32 %v353, 8
        %v355 = vadd.s32 %v353, 16
        %v356 = vadd.s32 %v353, 24
        %v357 = vadd.s32 %v353, 32
        %v358 = vadd.s32 %v353, 40
        %v359 = vadd.s32 %v353, 48
        %v360 = vadd.s32 %v353, 56
        %v361 = vadd.s32 %v353, 64
        %v362 = vadd.s32 %v353, 72
        %v363 = vadd.s32 %v353, 80
        %v364 = vadd.s32 %v353, 88
        %v365 = vadd.s32 %v353, 96
        %v366 = vadd.s32 %v353, 104
        %v367 = vadd.s32 %v353, 112
        %v368 = vadd.s32 %v353, 120
        %v369 = vadd.s32 %v353, 128
        %v370 = vadd.s32 %v353, 136
        %v371 = vadd.s32 %v353, 144
        %v372 = vadd.s32 %v353, 152
        %v373 = vadd.s32 %v353, 160
        %v374 = vadd.s32 %v353, 168
        %v375 = vadd.s32 %v353, 176
        %v376 = vadd.s32 %v353, 184
        %v377 = vadd.s32 %v353, 192
        %v378 = vadd.s32 %v353, 200
        %v379 = vadd.s32 %v353, 208
        %v380 = vadd.s32 %v353, 216
        %v381 = vadd.s32 %v353, 224
        %v382 = vadd.s32 %v353, 232
        %v383 = vadd.s32 %v353, 240
        %v384 = vadd.s32 %v353, 248
        %v385 = vstv %s351
        %v386 = vsub.s32 %v348, %v385
        %v387 = vperm.slane %v386, 0
        %vm388 = vcmp.eq.s32.totalorder %v353, %v387
        %vm389 = vcmp.eq.s32.totalorder %v354, %v387
        %vm390 = vcmp.eq.s32.totalorder %v355, %v387
        %vm391 = vcmp.eq.s32.totalorder %v356, %v387
        %vm392 = vcmp.eq.s32.totalorder %v357, %v387
        %vm393 = vcmp.eq.s32.totalorder %v358, %v387
        %vm394 = vcmp.eq.s32.totalorder %v359, %v387
        %vm395 = vcmp.eq.s32.totalorder %v360, %v387
        %vm396 = vcmp.eq.s32.totalorder %v361, %v387
        %vm397 = vcmp.eq.s32.totalorder %v362, %v387
        %vm398 = vcmp.eq.s32.totalorder %v363, %v387
        %vm399 = vcmp.eq.s32.totalorder %v364, %v387
        %vm400 = vcmp.eq.s32.totalorder %v365, %v387
        %vm401 = vcmp.eq.s32.totalorder %v366, %v387
        %vm402 = vcmp.eq.s32.totalorder %v367, %v387
        %vm403 = vcmp.eq.s32.totalorder %v368, %v387
        %vm404 = vcmp.eq.s32.totalorder %v369, %v387
        %vm405 = vcmp.eq.s32.totalorder %v370, %v387
        %vm406 = vcmp.eq.s32.totalorder %v371, %v387
        %vm407 = vcmp.eq.s32.totalorder %v372, %v387
        %vm408 = vcmp.eq.s32.totalorder %v373, %v387
        %vm409 = vcmp.eq.s32.totalorder %v374, %v387
        %vm410 = vcmp.eq.s32.totalorder %v375, %v387
        %vm411 = vcmp.eq.s32.totalorder %v376, %v387
        %vm412 = vcmp.eq.s32.totalorder %v377, %v387
        %vm413 = vcmp.eq.s32.totalorder %v378, %v387
        %vm414 = vcmp.eq.s32.totalorder %v379, %v387
        %vm415 = vcmp.eq.s32.totalorder %v380, %v387
        %vm416 = vcmp.eq.s32.totalorder %v381, %v387
        %vm417 = vcmp.eq.s32.totalorder %v382, %v387
        %vm418 = vcmp.eq.s32.totalorder %v383, %v387
        %vm419 = vcmp.eq.s32.totalorder %v384, %v387
        %v420 = vsel %vm388, 1, 0
        %v421 = vsel %vm389, 1, 0
        %v422 = vsel %vm390, 1, 0
        %v423 = vsel %vm391, 1, 0
        %v424 = vsel %vm392, 1, 0
        %v425 = vsel %vm393, 1, 0
        %v426 = vsel %vm394, 1, 0
        %v427 = vsel %vm395, 1, 0
        %v428 = vsel %vm396, 1, 0
        %v429 = vsel %vm397, 1, 0
        %v430 = vsel %vm398, 1, 0
        %v431 = vsel %vm399, 1, 0
        %v432 = vsel %vm400, 1, 0
        %v433 = vsel %vm401, 1, 0
        %v434 = vsel %vm402, 1, 0
        %v435 = vsel %vm403, 1, 0
        %v436 = vsel %vm404, 1, 0
        %v437 = vsel %vm405, 1, 0
        %v438 = vsel %vm406, 1, 0
        %v439 = vsel %vm407, 1, 0
        %v440 = vsel %vm408, 1, 0
        %v441 = vsel %vm409, 1, 0
        %v442 = vsel %vm410, 1, 0
        %v443 = vsel %vm411, 1, 0
        %v444 = vsel %vm412, 1, 0
        %v445 = vsel %vm413, 1, 0
        %v446 = vsel %vm414, 1, 0
        %v447 = vsel %vm415, 1, 0
        %v448 = vsel %vm416, 1, 0
        %v449 = vsel %vm417, 1, 0
        %v450 = vsel %vm418, 1, 0
        %v451 = vsel %vm419, 1, 0
        %v452 = vcvt.s32.f32 %v420
        %v453 = vcvt.s32.f32 %v421
        %v454 = vcvt.s32.f32 %v422
        %v455 = vcvt.s32.f32 %v423
        %v456 = vcvt.s32.f32 %v424
        %v457 = vcvt.s32.f32 %v425
        %v458 = vcvt.s32.f32 %v426
        %v459 = vcvt.s32.f32 %v427
        %v460 = vcvt.s32.f32 %v428
        %v461 = vcvt.s32.f32 %v429
        %v462 = vcvt.s32.f32 %v430
        %v463 = vcvt.s32.f32 %v431
        %v464 = vcvt.s32.f32 %v432
        %v465 = vcvt.s32.f32 %v433
        %v466 = vcvt.s32.f32 %v434
        %v467 = vcvt.s32.f32 %v435
        %v468 = vcvt.s32.f32 %v436
        %v469 = vcvt.s32.f32 %v437
        %v470 = vcvt.s32.f32 %v438
        %v471 = vcvt.s32.f32 %v439
        %v472 = vcvt.s32.f32 %v440
        %v473 = vcvt.s32.f32 %v441
        %v474 = vcvt.s32.f32 %v442
        %v475 = vcvt.s32.f32 %v443
        %v476 = vcvt.s32.f32 %v444
        %v477 = vcvt.s32.f32 %v445
        %v478 = vcvt.s32.f32 %v446
        %v479 = vcvt.s32.f32 %v447
        %v480 = vcvt.s32.f32 %v448
        %v481 = vcvt.s32.f32 %v449
        %v482 = vcvt.s32.f32 %v450
        %v483 = vcvt.s32.f32 %v451
        %v484 = vpack.c.bf16 %v453, %v452
        %v485 = vpack.c.bf16 %v455, %v454
        %v486 = vpack.c.bf16 %v457, %v456
        %v487 = vpack.c.bf16 %v459, %v458
        %v488 = vpack.c.bf16 %v461, %v460
        %v489 = vpack.c.bf16 %v463, %v462
        %v490 = vpack.c.bf16 %v465, %v464
        %v491 = vpack.c.bf16 %v467, %v466
        %v492 = vpack.c.bf16 %v469, %v468
        %v493 = vpack.c.bf16 %v471, %v470
        %v494 = vpack.c.bf16 %v473, %v472
        %v495 = vpack.c.bf16 %v475, %v474
        %v496 = vpack.c.bf16 %v477, %v476
        %v497 = vpack.c.bf16 %v479, %v478
        %v498 = vpack.c.bf16 %v481, %v480
        %v499 = vpack.c.bf16 %v483, %v482
        %501 = vst [vmem:[#allocation1] ss:$2 sm:$0xff] %v347
        %v502 = vld.sshfl [vmem:[#allocation1] sm:$0xff pattern:$0x75316420]
        %v503 = vld.sshfl [vmem:[#allocation1 + $0x8] sm:$0xff pattern:$0x75316420]
        %v506 = vpack.c.bf16 %v503, %v502
        %v507 = vunpack.c.l.bf16 %v506
        %v508 = vunpack.c.h.bf16 %v506
        %v511 = vrot.slane %v508, 4
        %vm512 = vcmask 1043456
        %v513 = vsel %vm512, %v507, %v511
        %v515 = vsub.f32 %v347, %v513
        %517 = vst [vmem:[#allocation1] ss:$2 sm:$0xff] %v515
        %v518 = vld.sshfl [vmem:[#allocation1] sm:$0xff pattern:$0x75316420]
        %v519 = vld.sshfl [vmem:[#allocation1 + $0x8] sm:$0xff pattern:$0x75316420]
        %v522 = vpack.c.bf16 %v519, %v518
        %v523 = vunpack.c.l.bf16 %v522
        %v524 = vunpack.c.h.bf16 %v522
        %v527 = vrot.slane %v524, 4
        %v528 = vsel %vm512, %v523, %v527
        %v530 = vsub.f32 %v515, %v528
        %532 = vst [vmem:[#allocation1] ss:$2 sm:$0xff] %v530
        %v533 = vld.sshfl [vmem:[#allocation1] sm:$0xff pattern:$0x75316420]
        %v534 = vld.sshfl [vmem:[#allocation1 + $0x8] sm:$0xff pattern:$0x75316420]
        %v537 = vpack.c.bf16 %v533, %v533
        %v538 = vpack.c.bf16 %v534, %v534
        %v540 = vunpack.c.l.b16 %v522
        %v541 = vunpack.c.h.b16 %v522
        %v542 = vpack.c.b16 %v540, %v540
        %v543 = vpack.c.b16 %v541, %v541
        %546 = vmatpush.bf16.msra.mxu0 %v491
        %547 = vmatpush.bf16.msra.mxu0 %v490
        %548 = vmatpush.bf16.msra.mxu0 %v489
        %549 = vmatpush.bf16.msra.mxu0 %v488
        %550 = vmatpush.bf16.msra.mxu0 %v487
        %551 = vmatpush.bf16.msra.mxu0 %v486
        %552 = vmatpush.bf16.msra.mxu0 %v485
        %553 = vmatpush.bf16.msra.mxu0 %v484
        %554 = vmatmul.bf16.gmra.mxu0 %v542
        %v555 = vpop.f32.mrf.mxu0
        %v556 = vadd.f32 0.0, %v555
        %v557 = vpop.f32.mrf.mxu0
        %558 = vdwg.mxu0
        %559 = vmatpush.bf16.msra.mxu0 %v499
        %560 = vmatpush.bf16.msra.mxu0 %v498
        %561 = vmatpush.bf16.msra.mxu0 %v497
        %562 = vmatpush.bf16.msra.mxu0 %v496
        %563 = vmatpush.bf16.msra.mxu0 %v495
        %564 = vmatpush.bf16.msra.mxu0 %v494
        %565 = vmatpush.bf16.msra.mxu0 %v493
        %566 = vmatpush.bf16.msra.mxu0 %v492
        %567 = vmatmul.bf16.gmra.mxu0 %v543
        %v568 = vpop.f32.mrf.mxu0
        %v569 = vadd.f32 %v556, %v568
        %v570 = vpop.f32.mrf.mxu0
        %571 = vdwg.mxu0
        %v573 = vunpack.c.l.b16 %v506
        %v574 = vunpack.c.h.b16 %v506
        %v575 = vpack.c.b16 %v573, %v573
        %v576 = vpack.c.b16 %v574, %v574
        %579 = vmatpush.bf16.msra.mxu0 %v491
        %580 = vmatpush.bf16.msra.mxu0 %v490
        %581 = vmatpush.bf16.msra.mxu0 %v489
        %582 = vmatpush.bf16.msra.mxu0 %v488
        %583 = vmatpush.bf16.msra.mxu0 %v487
        %584 = vmatpush.bf16.msra.mxu0 %v486
        %585 = vmatpush.bf16.msra.mxu0 %v485
        %586 = vmatpush.bf16.msra.mxu0 %v484
        %587 = vmatmul.bf16.gmra.mxu0 %v575
        %v588 = vpop.f32.mrf.mxu0
        %v589 = vadd.f32 %v569, %v588
        %v590 = vpop.f32.mrf.mxu0
        %591 = vdwg.mxu0
        %592 = vmatpush.bf16.msra.mxu0 %v499
        %593 = vmatpush.bf16.msra.mxu0 %v498
        %594 = vmatpush.bf16.msra.mxu0 %v497
        %595 = vmatpush.bf16.msra.mxu0 %v496
        %596 = vmatpush.bf16.msra.mxu0 %v495
        %597 = vmatpush.bf16.msra.mxu0 %v494
        %598 = vmatpush.bf16.msra.mxu0 %v493
        %599 = vmatpush.bf16.msra.mxu0 %v492
        %600 = vmatmul.bf16.gmra.mxu0 %v576
        %v601 = vpop.f32.mrf.mxu0
        %v602 = vadd.f32 %v589, %v601
        %v603 = vpop.f32.mrf.mxu0
        %604 = vdwg.mxu0
        %605 = vmatpush.bf16.msra.mxu0 %v491
        %606 = vmatpush.bf16.msra.mxu0 %v490
        %607 = vmatpush.bf16.msra.mxu0 %v489
        %608 = vmatpush.bf16.msra.mxu0 %v488
        %609 = vmatpush.bf16.msra.mxu0 %v487
        %610 = vmatpush.bf16.msra.mxu0 %v486
        %611 = vmatpush.bf16.msra.mxu0 %v485
        %612 = vmatpush.bf16.msra.mxu0 %v484
        %613 = vmatmul.bf16.gmra.mxu0 %v537
        %v614 = vpop.f32.mrf.mxu0
        %v615 = vadd.f32 0.0, %v614
        %v616 = vpop.f32.mrf.mxu0
        %617 = vdwg.mxu0
        %618 = vmatpush.bf16.msra.mxu0 %v499
        %619 = vmatpush.bf16.msra.mxu0 %v498
        %620 = vmatpush.bf16.msra.mxu0 %v497
        %621 = vmatpush.bf16.msra.mxu0 %v496
        %622 = vmatpush.bf16.msra.mxu0 %v495
        %623 = vmatpush.bf16.msra.mxu0 %v494
        %624 = vmatpush.bf16.msra.mxu0 %v493
        %625 = vmatpush.bf16.msra.mxu0 %v492
        %626 = vmatmul.bf16.gmra.mxu0 %v538
        %v627 = vpop.f32.mrf.mxu0
        %v628 = vadd.f32 %v615, %v627
        %v629 = vpop.f32.mrf.mxu0
        %630 = vdwg.mxu0
        %v631 = vadd.f32 %v602, %v628
        %vm632 = vcmp.ne.f32.partialorder %v349, %v349
        %vm633 = vmxor %vm632, 1
        %v634 = vsel %vm633, 1, 0
        %v635 = vcvt.s32.f32 %v634
        %v637 = vperm.slane %v350, 0
        %v639 = vmul.f32 %v637, %v635
        %vm640 = vcmp.ge.s32.totalorder %v348, %v385
        %s641 = sadd.s32 %s351, 256
        %v642 = vstv %s641
        %vm643 = vcmp.lt.s32.totalorder %v348, %v642
        %vm644 = vmand %vm640, %vm643
        %v645 = vsub.f32 %v631, %v349
        %v646 = vand.u32 2147483647, %v645
        %v647 = vmul.f32 %v646, %v639
        %v648 = vsel %vm644, 1, 0
        %v649 = vperm.slane %v648, 0
        %vm650 = vcmp.eq.s32.totalorder %v649, 1
        %v651 = vsel %vm650, %v647, 0.0
        %v652 = vsel %vm512, %v651, 0.0
        %653 = vadd.xlane.f32.xlu0 %v652
        %v654 = vpop.xlane.xlu0 %653
        %vm655 = vcmask 3072
        %656 = vst.msk [vmem:[%s346] sm:$0xf] %vm655, %v654
        %p657 = scmp.lt.s32.totalorder %s28, 1
        %s658 = scalar_select %p657, %s28, 1
        %p659 = scmp.lt.s32.totalorder %s29, 0
        %s660 = scalar_select %p659, %s29, 0
        %s661 = sadd.s32 %s660, %s658
        %s662 = smul.addr %s661, 4
        %s663 = scalar_lea.vmem %s4, %s662
        // Predicated region
        $region53: #{tpu_custom_call.1} parent=35 // pred_check
          %p664 = pneg %p162
        $region54: #{tpu_custom_call.1} parent=35 // pred_check_branch
          %666 = sbr.rel (%p664) target = $region56
        $region55: #{tpu_custom_call.1} parent=35 // pred_region
          _
        $region56: #{tpu_custom_call.1} parent=35 // pred_fallthru
          _
      $region36: #{tpu_custom_call.1} parent=5 // pred_fallthru
        _
      %p667 = scmp.le.s32.totalorder 2, %s19
      // Predicated region
      $region57: #{tpu_custom_call.1} parent=5 // pred_check
        %p668 = pneg %p667
      $region58: #{tpu_custom_call.1} parent=5 // pred_check_branch
        %670 = sbr.rel (%p668) target = $region60
      $region59: #{tpu_custom_call.1} parent=5 // pred_region
        %s671 = ssub.s32 %s19, 2
        // Predicated region
        $region61: #{tpu_custom_call.1} parent=59 // pred_check
          %p672 = pneg %p168
        $region62: #{tpu_custom_call.1} parent=59 // pred_check_branch
          %674 = sbr.rel (%p672) target = $region64
        $region63: #{tpu_custom_call.1} parent=59 // pred_region
          %p675 = scmp.lt.s32.totalorder %s30, 1
          %s676 = scalar_select %p675, %s30, 1
          %p677 = scmp.lt.s32.totalorder %s31, 0
          %s678 = scalar_select %p677, %s31, 0
          %s679 = sadd.s32 %s678, %s676
          %s680 = smul.addr %s679, 4
          %s681 = scalar_lea.vmem %s4, %s680
        $region64: #{tpu_custom_call.1} parent=59 // pred_fallthru
          _
      $region60: #{tpu_custom_call.1} parent=5 // pred_fallthru
        _
    $region6: #{tpu_custom_call.1} parent=1 // loop_footer
      %s23 = sadd.s32 1, %s19
    $region7: #{tpu_custom_call.1} parent=1 // loop_footer_branch
      %18 = sbr.rel target = $region3
    $region8: #{tpu_custom_call.1} parent=1 // loop_exit
      _
    %682 = vsyncpa [#allocation3], 1
    %s683 = scalar_lea.sflag [#allocation3], 1
    %684 = vsyncpa %s683, 1
    %685 = vsyncpa [#allocation5], 1
    %s686 = scalar_lea.sflag [#allocation5], 1
    %687 = vsyncpa %s686, 1
    %688 = vsyncpa [#allocation8], 1
    %s689 = scalar_lea.sflag [#allocation8], 1
    %690 = vsyncpa %s689, 1

</llo_original>
